<compile_context>
chip_gen: v5e
topology: v5e:2x2
jax: 0.10.0
libtpu: 0.0.40
codegen_flags: <defaults>
</compile_context>

<pallas_src>
import math
import numpy as np
import jax
import jax.numpy as jnp
from jax.experimental import pallas as pl
from jax.experimental.pallas import tpu as pltpu


# ----------------------------- beta schedule (host-side, numpy) -----------------------------
def _warmup_beta(linear_start, linear_end, n_timestep, warmup_frac):
    betas = linear_end * np.ones(n_timestep, dtype=np.float64)
    warmup_time = int(n_timestep * warmup_frac)
    betas[:warmup_time] = np.linspace(linear_start, linear_end, warmup_time, dtype=np.float64)
    return betas


def make_beta_schedule(schedule, n_timestep, linear_start=1e-4, linear_end=2e-2, cosine_s=8e-3):
    if schedule == 'const':
        betas = linear_end * np.ones(n_timestep, dtype=np.float64)
    elif schedule == 'linear':
        betas = np.linspace(linear_start, linear_end, n_timestep, dtype=np.float64)
    elif schedule == 'warmup10':
        betas = _warmup_beta(linear_start, linear_end, n_timestep, 0.1)
    elif schedule == 'warmup50':
        betas = _warmup_beta(linear_start, linear_end, n_timestep, 0.5)
    elif schedule == 'quad':
        betas = np.linspace(linear_start ** 0.5, linear_end ** 0.5, n_timestep, dtype=np.float64) ** 2
    elif schedule == 'jsd':
        betas = 1.0 / np.linspace(n_timestep, 1, n_timestep, dtype=np.float64)
    elif schedule == 'cosine':
        timesteps = np.arange(n_timestep + 1, dtype=np.float64) / n_timestep + cosine_s
        alphas = np.cos(timesteps / (1 + cosine_s) * math.pi / 2) ** 2
        alphas = alphas / alphas[0]
        betas = 1 - alphas[1:] / alphas[:-1]
        betas = np.clip(betas, a_min=None, a_max=0.999)
    else:
        raise NotImplementedError(schedule)
    return betas


# ----------------------------- Pallas kernel -----------------------------
def _p_losses_kernel(ca_ref, sa_ref,               # SMEM scalar-prefetch: per-batch c and sqrt(1-c^2), shape (B,)
                     x_ref, e_ref, n_ref,          # (1, C, T) lane-dense spatial tiles
                     w1xT_ref, w1nT_ref,           # (HID, C), (HID, C)   -> split W1, removes the concat
                     b1_ref, temb_ref,             # (HID, 1), (HID, 1)
                     w2T_ref, b2_ref,              # (C, HID), (C, 1)
                     out_ref):                     # (1, C, T) per-batch partial-sum accumulator (resident across k)
    b = pl.program_id(0)
    k = pl.program_id(1)

    c = ca_ref[b]                                  # continuous sqrt_alpha_cumprod for this batch element
    s = sa_ref[b]                                  # sqrt(1 - c^2) (precomputed in the wrapper)

    x = x_ref[0]                                   # (C, T)
    e = e_ref[0]
    nz = n_ref[0]

    # q_sample on x_start = x - e
    x_noisy = c * (x - e) + s * nz

    # pointwise conv 1 (transposed orientation: DHW stays on lanes) + noise-level embedding + SiLU
    h = (jnp.dot(w1xT_ref[...], x, preferred_element_type=jnp.float32)
         + jnp.dot(w1nT_ref[...], x_noisy, preferred_element_type=jnp.float32))   # (HID, T)
    h = h + b1_ref[...] + c * temb_ref[...]
    h = h * jax.nn.sigmoid(h)

    # pointwise conv 2 back to C channels
    out = jnp.dot(w2T_ref[...], h, preferred_element_type=jnp.float32) + b2_ref[...]   # (C, T)

    # l2 loss partial sums: pure VPU accumulate into the resident output block;
    # the cross-lane reduction and mean happen once in the wrapper.
    diff = nz - out

    @pl.when(k == 0)
    def _():
        out_ref[...] = jnp.zeros_like(out_ref)

    out_ref[0] = out_ref[0] + diff * diff


def _pick_spatial_tile(dhw, cap=2048):
    """Largest lane-multiple divisor of DHW up to `cap` (or full DHW if not 128-divisible)."""
    if dhw % 128 != 0:
        return dhw
    t = min(dhw, cap)
    while dhw % t != 0:
        t -= 128
    return t


def p_losses_pallas(x, e, noise, sqrt_alpha, params):
    """x, e, noise: [B, C, D, H, W] float32; sqrt_alpha: [B] float32."""
    B, C, D, H, W = x.shape
    DHW = D * H * W
    w1, b1, temb, w2, b2 = params
    HID = w1.shape[1]

    T = _pick_spatial_tile(DHW)
    n_tiles = DHW // T

    # Free reshape of contiguous NCDHW -> (B, C, DHW); no HBM transpose.
    xr = x.reshape(B, C, DHW)
    er = e.reshape(B, C, DHW)
    nr = noise.reshape(B, C, DHW)

    # Precompute the per-batch q_sample noise scale on the host/XLA side (tiny).
    sigma = jnp.sqrt(jnp.maximum(1.0 - sqrt_alpha * sqrt_alpha, 0.0))

    # Weights in transposed orientation so matmuls keep DHW on the lane axis.
    w1xT = jnp.transpose(w1[:C])       # (HID, C)  -- acts on condition x
    w1nT = jnp.transpose(w1[C:])       # (HID, C)  -- acts on x_noisy
    b1c = b1.reshape(HID, 1)
    tembc = temb.reshape(HID, 1)
    w2T = jnp.transpose(w2)            # (C, HID)
    b2c = b2.reshape(C, 1)

    grid_spec = pltpu.PrefetchScalarGridSpec(
        num_scalar_prefetch=2,
        grid=(B, n_tiles),
        in_specs=[
            pl.BlockSpec((1, C, T), lambda b, k, ca, sa: (b, 0, k)),   # x
            pl.BlockSpec((1, C, T), lambda b, k, ca, sa: (b, 0, k)),   # e
            pl.BlockSpec((1, C, T), lambda b, k, ca, sa: (b, 0, k)),   # noise
            pl.BlockSpec((HID, C), lambda b, k, ca, sa: (0, 0)),       # W1x^T
            pl.BlockSpec((HID, C), lambda b, k, ca, sa: (0, 0)),       # W1n^T
            pl.BlockSpec((HID, 1), lambda b, k, ca, sa: (0, 0)),       # b1
            pl.BlockSpec((HID, 1), lambda b, k, ca, sa: (0, 0)),       # temb
            pl.BlockSpec((C, HID), lambda b, k, ca, sa: (0, 0)),       # W2^T
            pl.BlockSpec((C, 1), lambda b, k, ca, sa: (0, 0)),         # b2
        ],
        # Per-batch partial-sum block, resident across the spatial (k) axis.
        out_specs=pl.BlockSpec((1, C, T), lambda b, k, ca, sa: (b, 0, 0)),
    )

    partials = pl.pallas_call(
        _p_losses_kernel,
        out_shape=jax.ShapeDtypeStruct((B, C, T), jnp.float32),
        grid_spec=grid_spec,
        compiler_params=pltpu.CompilerParams(
            dimension_semantics=("parallel", "arbitrary")),
    )(sqrt_alpha, sigma, xr, er, nr, w1xT, w1nT, b1c, tembc, w2T, b2c)

    # nn.MSELoss -> mean over all elements.
    return jnp.sum(partials) / (B * C * D * H * W)


# ----------------------------- pure-JAX reference -----------------------------
def p_losses_reference(x, e, noise, sqrt_alpha, params):
    w1, b1, temb, w2, b2 = params
    c = sqrt_alpha.reshape(-1, 1, 1, 1, 1)
    x_start = x - e
    x_noisy = c * x_start + jnp.sqrt(1.0 - c ** 2) * noise
    inp = jnp.concatenate([x, x_noisy], axis=1)                        # channel cat
    h = jnp.einsum('bcdhw,ck->bkdhw', inp, w1)
    h = h + b1.reshape(1, -1, 1, 1, 1) + c * temb.reshape(1, -1, 1, 1, 1)
    h = h * jax.nn.sigmoid(h)
    out = jnp.einsum('bkdhw,kc->bcdhw', h, w2) + b2.reshape(1, -1, 1, 1, 1)
    return jnp.mean((noise - out) ** 2)


# ----------------------------- driver -----------------------------
if __name__ == "__main__":
    B, C, D, H, W = 2, 4, 2, 8, 8
    HID = 32
    N_TIMESTEP = 100

    # noise schedule (set_new_noise_schedule, 'linear')
    betas = make_beta_schedule('linear', N_TIMESTEP, linear_start=1e-4, linear_end=2e-2)
    alphas_cumprod = np.cumprod(1.0 - betas)
    sqrt_alphas_cumprod_prev = np.sqrt(np.append(1.0, alphas_cumprod))

    # deterministic "random" timestep / per-batch continuous sqrt_alpha (p_losses).
    # Note: sqrt_alphas_cumprod_prev is decreasing, so order the uniform bounds explicitly.
    rng_np = np.random.default_rng(0)
    t = int(rng_np.integers(1, N_TIMESTEP + 1))
    lo = float(min(sqrt_alphas_cumprod_prev[t - 1], sqrt_alphas_cumprod_prev[t]))
    hi = float(max(sqrt_alphas_cumprod_prev[t - 1], sqrt_alphas_cumprod_prev[t]))
    sqrt_alpha = rng_np.uniform(lo, hi, size=B).astype(np.float32)
    sqrt_alpha = jnp.asarray(sqrt_alpha)

    # deterministic inputs and synthetic denoise-net parameters
    key = jax.random.PRNGKey(0)
    kx, ky, ke, kn, kw1, kw2, kt = jax.random.split(key, 7)
    x = jax.random.normal(kx, (B, C, D, H, W), jnp.float32)
    y = jax.random.normal(ky, (B, C, D, H, W), jnp.float32)   # unused by p_losses (matches PyTorch)
    e = jax.random.normal(ke, (B, C, D, H, W), jnp.float32)
    noise = jax.random.normal(kn, (B, C, D, H, W), jnp.float32)

    w1 = (jax.random.normal(kw1, (2 * C, HID), jnp.float32) * (1.0 / math.sqrt(2 * C)))
    b1 = jnp.zeros((1, HID), jnp.float32)
    temb = (jax.random.normal(kt, (1, HID), jnp.float32) * 0.1)
    w2 = (jax.random.normal(kw2, (HID, C), jnp.float32) * (1.0 / math.sqrt(HID)))
    b2 = jnp.zeros((1, C), jnp.float32)
    params = (w1, b1, temb, w2, b2)

    loss = p_losses_pallas(x, e, noise, sqrt_alpha, params)
    loss = jax.block_until_ready(loss)

    ref = p_losses_reference(x, e, noise, sqrt_alpha, params)
    assert np.allclose(np.asarray(loss), np.asarray(ref), rtol=1e-4, atol=1e-5), (loss, ref)

    print("KERNEL_OK")
</pallas_src>

<mosaic_0001>
module attributes {stable_mosaic.version = 11 : i64} {
  func.func @_p_losses_kernel(%arg0: i32, %arg1: i32, %arg2: memref<2xf32, #tpu.memory_space<smem>>, %arg3: memref<2xf32, #tpu.memory_space<smem>>, %arg4: memref<1x4x128xf32, #tpu.memory_space<vmem>>, %arg5: memref<1x4x128xf32, #tpu.memory_space<vmem>>, %arg6: memref<1x4x128xf32, #tpu.memory_space<vmem>>, %arg7: memref<32x4xf32, #tpu.memory_space<vmem>>, %arg8: memref<32x4xf32, #tpu.memory_space<vmem>>, %arg9: memref<32x1xf32, #tpu.memory_space<vmem>>, %arg10: memref<32x1xf32, #tpu.memory_space<vmem>>, %arg11: memref<4x32xf32, #tpu.memory_space<vmem>>, %arg12: memref<4x1xf32, #tpu.memory_space<vmem>>, %arg13: memref<1x4x128xf32, #tpu.memory_space<vmem>>) attributes {dimension_semantics = [#tpu.dimension_semantics<parallel>, #tpu.dimension_semantics<arbitrary>], iteration_bounds = array<i64: 2, 1>, scalar_prefetch = 2 : i64, scratch_operands = 0 : i64, tpu.core_type = #tpu.core_type<tc>, window_params = [{transform_indices = @transform_0, window_bounds = array<i64: 1, 4, 128>}, {transform_indices = @transform_1, window_bounds = array<i64: 1, 4, 128>}, {transform_indices = @transform_2, window_bounds = array<i64: 1, 4, 128>}, {pipeline_mode = #tpu.pipeline_mode<synchronous>, transform_indices = @transform_3, window_bounds = array<i64: 32, 4>}, {pipeline_mode = #tpu.pipeline_mode<synchronous>, transform_indices = @transform_4, window_bounds = array<i64: 32, 4>}, {pipeline_mode = #tpu.pipeline_mode<synchronous>, transform_indices = @transform_5, window_bounds = array<i64: 32, 1>}, {pipeline_mode = #tpu.pipeline_mode<synchronous>, transform_indices = @transform_6, window_bounds = array<i64: 32, 1>}, {pipeline_mode = #tpu.pipeline_mode<synchronous>, transform_indices = @transform_7, window_bounds = array<i64: 4, 32>}, {pipeline_mode = #tpu.pipeline_mode<synchronous>, transform_indices = @transform_8, window_bounds = array<i64: 4, 1>}, {transform_indices = @transform_9, window_bounds = array<i64: 1, 4, 128>}]} {
    %0 = arith.index_cast %arg0 : i32 to index
    %1 = memref.load %arg2[%0] : memref<2xf32, #tpu.memory_space<smem>>
    %2 = arith.index_cast %arg0 : i32 to index
    %3 = memref.load %arg3[%2] : memref<2xf32, #tpu.memory_space<smem>>
    %c0 = arith.constant 0 : index
    %c0_0 = arith.constant 0 : index
    %c0_1 = arith.constant 0 : index
    %4 = vector.load %arg4[%c0, %c0_0, %c0_1] : memref<1x4x128xf32, #tpu.memory_space<vmem>>, vector<1x4x128xf32>
    %5 = vector.shape_cast %4 : vector<1x4x128xf32> to vector<4x128xf32>
    %c0_2 = arith.constant 0 : index
    %c0_3 = arith.constant 0 : index
    %c0_4 = arith.constant 0 : index
    %6 = vector.load %arg5[%c0_2, %c0_3, %c0_4] : memref<1x4x128xf32, #tpu.memory_space<vmem>>, vector<1x4x128xf32>
    %7 = vector.shape_cast %6 : vector<1x4x128xf32> to vector<4x128xf32>
    %c0_5 = arith.constant 0 : index
    %c0_6 = arith.constant 0 : index
    %c0_7 = arith.constant 0 : index
    %8 = vector.load %arg6[%c0_5, %c0_6, %c0_7] : memref<1x4x128xf32, #tpu.memory_space<vmem>>, vector<1x4x128xf32>
    %9 = vector.shape_cast %8 : vector<1x4x128xf32> to vector<4x128xf32>
    %10 = arith.subf %5, %7 : vector<4x128xf32>
    %11 = vector.broadcast %1 : f32 to vector<4x128xf32>
    %12 = arith.mulf %11, %10 : vector<4x128xf32>
    %13 = vector.broadcast %3 : f32 to vector<4x128xf32>
    %14 = arith.mulf %13, %9 : vector<4x128xf32>
    %15 = arith.addf %12, %14 : vector<4x128xf32>
    %c0_8 = arith.constant 0 : index
    %c0_9 = arith.constant 0 : index
    %16 = vector.load %arg7[%c0_8, %c0_9] : memref<32x4xf32, #tpu.memory_space<vmem>>, vector<32x4xf32>
    %cst = arith.constant dense<0.000000e+00> : vector<32x128xf32>
    %17 = tpu.matmul %16, %5, %cst {dimension_numbers = #tpu.dot_dimension_numbers<[1], [0], [0], [1], [0, 0, 1, 1], [], []>} : vector<32x4xf32>, vector<4x128xf32>, vector<32x128xf32> -> vector<32x128xf32>
    %c0_10 = arith.constant 0 : index
    %c0_11 = arith.constant 0 : index
    %18 = vector.load %arg8[%c0_10, %c0_11] : memref<32x4xf32, #tpu.memory_space<vmem>>, vector<32x4xf32>
    %cst_12 = arith.constant dense<0.000000e+00> : vector<32x128xf32>
    %19 = tpu.matmul %18, %15, %cst_12 {dimension_numbers = #tpu.dot_dimension_numbers<[1], [0], [0], [1], [0, 0, 1, 1], [], []>} : vector<32x4xf32>, vector<4x128xf32>, vector<32x128xf32> -> vector<32x128xf32>
    %20 = arith.addf %17, %19 : vector<32x128xf32>
    %c0_13 = arith.constant 0 : index
    %c0_14 = arith.constant 0 : index
    %21 = vector.load %arg9[%c0_13, %c0_14] : memref<32x1xf32, #tpu.memory_space<vmem>>, vector<32x1xf32>
    %22 = vector.broadcast %21 : vector<32x1xf32> to vector<32x128xf32>
    %23 = arith.addf %20, %22 : vector<32x128xf32>
    %c0_15 = arith.constant 0 : index
    %c0_16 = arith.constant 0 : index
    %24 = vector.load %arg10[%c0_15, %c0_16] : memref<32x1xf32, #tpu.memory_space<vmem>>, vector<32x1xf32>
    %25 = vector.broadcast %1 : f32 to vector<32x1xf32>
    %26 = arith.mulf %25, %24 : vector<32x1xf32>
    %27 = vector.broadcast %26 : vector<32x1xf32> to vector<32x128xf32>
    %28 = arith.addf %23, %27 : vector<32x128xf32>
    %29 = arith.negf %28 : vector<32x128xf32>
    %30 = math.exp %29 : vector<32x128xf32>
    %cst_17 = arith.constant 1.000000e+00 : f32
    %31 = vector.broadcast %cst_17 : f32 to vector<32x128xf32>
    %32 = arith.addf %31, %30 : vector<32x128xf32>
    %33 = arith.divf %31, %32 : vector<32x128xf32>
    %34 = arith.mulf %28, %33 : vector<32x128xf32>
    %c0_18 = arith.constant 0 : index
    %c0_19 = arith.constant 0 : index
    %35 = vector.load %arg11[%c0_18, %c0_19] : memref<4x32xf32, #tpu.memory_space<vmem>>, vector<4x32xf32>
    %cst_20 = arith.constant dense<0.000000e+00> : vector<4x128xf32>
    %36 = tpu.matmul %35, %34, %cst_20 {dimension_numbers = #tpu.dot_dimension_numbers<[1], [0], [0], [1], [0, 0, 1, 1], [], []>} : vector<4x32xf32>, vector<32x128xf32>, vector<4x128xf32> -> vector<4x128xf32>
    %c0_21 = arith.constant 0 : index
    %c0_22 = arith.constant 0 : index
    %37 = vector.load %arg12[%c0_21, %c0_22] : memref<4x1xf32, #tpu.memory_space<vmem>>, vector<4x1xf32>
    %38 = vector.broadcast %37 : vector<4x1xf32> to vector<4x128xf32>
    %39 = arith.addf %36, %38 : vector<4x128xf32>
    %40 = arith.subf %9, %39 : vector<4x128xf32>
    %c0_i32 = arith.constant 0 : i32
    %41 = arith.cmpi eq, %arg1, %c0_i32 : i32
    %42 = arith.extui %41 : i1 to i32
    %c0_i32_23 = arith.constant 0 : i32
    %43 = arith.cmpi ne, %42, %c0_i32_23 : i32
    scf.if %43 {
      %cst_30 = arith.constant 0.000000e+00 : f32
      %51 = vector.broadcast %cst_30 : f32 to vector<1x4x128xf32>
      %c0_31 = arith.constant 0 : index
      %c0_32 = arith.constant 0 : index
      %c0_33 = arith.constant 0 : index
      %52 = vector.load %arg13[%c0_31, %c0_32, %c0_33] : memref<1x4x128xf32, #tpu.memory_space<vmem>>, vector<1x4x128xf32>
      tpu.vector_store %arg13[%c0_31, %c0_32, %c0_33], %51 {strides = array<i32>} : memref<1x4x128xf32, #tpu.memory_space<vmem>>, vector<1x4x128xf32>,
    } else {
    }
    %c0_24 = arith.constant 0 : index
    %c0_25 = arith.constant 0 : index
    %c0_26 = arith.constant 0 : index
    %44 = vector.load %arg13[%c0_24, %c0_25, %c0_26] : memref<1x4x128xf32, #tpu.memory_space<vmem>>, vector<1x4x128xf32>
    %45 = vector.shape_cast %44 : vector<1x4x128xf32> to vector<4x128xf32>
    %46 = arith.mulf %40, %40 : vector<4x128xf32>
    %47 = arith.addf %45, %46 : vector<4x128xf32>
    %c0_27 = arith.constant 0 : index
    %c0_28 = arith.constant 0 : index
    %c0_29 = arith.constant 0 : index
    %48 = vector.load %arg13[%c0_27, %c0_28, %c0_29] : memref<1x4x128xf32, #tpu.memory_space<vmem>>, vector<1x4x128xf32>
    %49 = vector.shape_cast %48 : vector<1x4x128xf32> to vector<4x128xf32>
    %50 = vector.shape_cast %47 : vector<4x128xf32> to vector<1x4x128xf32>
    tpu.vector_store %arg13[%c0_27, %c0_28, %c0_29], %50 {strides = array<i32>} : memref<1x4x128xf32, #tpu.memory_space<vmem>>, vector<1x4x128xf32>,
    return
  }
  func.func @transform_0(%arg0: i32, %arg1: i32, %arg2: memref<2xf32, #tpu.memory_space<smem>>, %arg3: memref<2xf32, #tpu.memory_space<smem>>) -> (i32, i32, i32) {
    %c0_i32 = arith.constant 0 : i32
    %c0_i32_0 = arith.constant 0 : i32
    return %arg0, %c0_i32, %arg1 : i32, i32, i32
  }
  func.func @transform_1(%arg0: i32, %arg1: i32, %arg2: memref<2xf32, #tpu.memory_space<smem>>, %arg3: memref<2xf32, #tpu.memory_space<smem>>) -> (i32, i32, i32) {
    %c0_i32 = arith.constant 0 : i32
    %c0_i32_0 = arith.constant 0 : i32
    return %arg0, %c0_i32, %arg1 : i32, i32, i32
  }
  func.func @transform_2(%arg0: i32, %arg1: i32, %arg2: memref<2xf32, #tpu.memory_space<smem>>, %arg3: memref<2xf32, #tpu.memory_space<smem>>) -> (i32, i32, i32) {
    %c0_i32 = arith.constant 0 : i32
    %c0_i32_0 = arith.constant 0 : i32
    return %arg0, %c0_i32, %arg1 : i32, i32, i32
  }
  func.func @transform_3(%arg0: i32, %arg1: i32, %arg2: memref<2xf32, #tpu.memory_space<smem>>, %arg3: memref<2xf32, #tpu.memory_space<smem>>) -> (i32, i32) {
    %c0_i32 = arith.constant 0 : i32
    %c0_i32_0 = arith.constant 0 : i32
    %c0_i32_1 = arith.constant 0 : i32
    return %c0_i32, %c0_i32_0 : i32, i32
  }
  func.func @transform_4(%arg0: i32, %arg1: i32, %arg2: memref<2xf32, #tpu.memory_space<smem>>, %arg3: memref<2xf32, #tpu.memory_space<smem>>) -> (i32, i32) {
    %c0_i32 = arith.constant 0 : i32
    %c0_i32_0 = arith.constant 0 : i32
    %c0_i32_1 = arith.constant 0 : i32
    return %c0_i32, %c0_i32_0 : i32, i32
  }
  func.func @transform_5(%arg0: i32, %arg1: i32, %arg2: memref<2xf32, #tpu.memory_space<smem>>, %arg3: memref<2xf32, #tpu.memory_space<smem>>) -> (i32, i32) {
    %c0_i32 = arith.constant 0 : i32
    %c0_i32_0 = arith.constant 0 : i32
    %c0_i32_1 = arith.constant 0 : i32
    return %c0_i32, %c0_i32_0 : i32, i32
  }
  func.func @transform_6(%arg0: i32, %arg1: i32, %arg2: memref<2xf32, #tpu.memory_space<smem>>, %arg3: memref<2xf32, #tpu.memory_space<smem>>) -> (i32, i32) {
    %c0_i32 = arith.constant 0 : i32
    %c0_i32_0 = arith.constant 0 : i32
    %c0_i32_1 = arith.constant 0 : i32
    return %c0_i32, %c0_i32_0 : i32, i32
  }
  func.func @transform_7(%arg0: i32, %arg1: i32, %arg2: memref<2xf32, #tpu.memory_space<smem>>, %arg3: memref<2xf32, #tpu.memory_space<smem>>) -> (i32, i32) {
    %c0_i32 = arith.constant 0 : i32
    %c0_i32_0 = arith.constant 0 : i32
    %c0_i32_1 = arith.constant 0 : i32
    return %c0_i32, %c0_i32_0 : i32, i32
  }
  func.func @transform_8(%arg0: i32, %arg1: i32, %arg2: memref<2xf32, #tpu.memory_space<smem>>, %arg3: memref<2xf32, #tpu.memory_space<smem>>) -> (i32, i32) {
    %c0_i32 = arith.constant 0 : i32
    %c0_i32_0 = arith.constant 0 : i32
    %c0_i32_1 = arith.constant 0 : i32
    return %c0_i32, %c0_i32_0 : i32, i32
  }
  func.func @transform_9(%arg0: i32, %arg1: i32, %arg2: memref<2xf32, #tpu.memory_space<smem>>, %arg3: memref<2xf32, #tpu.memory_space<smem>>) -> (i32, i32, i32) {
    %c0_i32 = arith.constant 0 : i32
    %c0_i32_0 = arith.constant 0 : i32
    %c0_i32_1 = arith.constant 0 : i32
    return %arg0, %c0_i32, %c0_i32_0 : i32, i32, i32
  }
}

</mosaic_0001>

<llo_original>
// kernel: tpu_custom_call.1
$region0: #{tpu_custom_call.1}
  #allocation0 [shape = 'u32[]', space=smem, size = 0x4, offset = 0x4, fixed_abs, tag = 'smem constant byte address 0x4 - core index']
  #allocation1 [shape = 'u32[72,128]{1,0:T(1,128)}', space=vmem, size = 0x9000, scoped, tag = 'internal scratch']
  #allocation2 [shape = 's32[1]{0}', space=sflag, size = 0x4, scoped, tag = 'scoped memory for tpu_custom_call.1']
  #allocation3 [shape = 'u8[512]{0}', space=smem, size = 0x200, scoped, tag = 'prefetched SMEM operand 0']
  #allocation4 [shape = 'u8[512]{0}', space=smem, size = 0x200, scoped, tag = 'prefetched SMEM operand 1']
  %s0 = inlined_call_operand.vmem [shape: f32[2], index: 0, kind: input, shape index: {}]
  %s1 = inlined_call_operand.vmem [shape: f32[2], index: 1, kind: input, shape index: {}]
  %s2 = inlined_call_operand.vmem [shape: f32[2,4,128], index: 2, kind: input, shape index: {}]
  %s3 = inlined_call_operand.vmem [shape: f32[2,4,128], index: 3, kind: input, shape index: {}]
  %s4 = inlined_call_operand.vmem [shape: f32[2,4,128], index: 4, kind: input, shape index: {}]
  %s5 = inlined_call_operand.vmem [shape: f32[32,4], index: 5, kind: input, shape index: {}]
  %s6 = inlined_call_operand.vmem [shape: f32[32,4], index: 6, kind: input, shape index: {}]
  %s7 = inlined_call_operand.vmem [shape: f32[32,1], index: 7, kind: input, shape index: {}]
  %s8 = inlined_call_operand.vmem [shape: f32[32,1], index: 8, kind: input, shape index: {}]
  %s9 = inlined_call_operand.vmem [shape: f32[4,32], index: 9, kind: input, shape index: {}]
  %s10 = inlined_call_operand.vmem [shape: f32[4,1], index: 10, kind: input, shape index: {}]
  %s11 = inlined_call_operand.hbm [shape: f32[2,4,128], index: 11, kind: output, shape index: {}]
  %s12 = sld [smem:[#allocation0]]
  $region73: #{tpu_custom_call.1} parent=0
    _
  %s14 = ssub.s32 1, %s12
  %s15 = scalar_select 0, %s14, %s12
  %s17 = sshll.u32 %s0, 4
  %s18 = int_to_ptr.vmem [resolvable:$true] %s17
  %20 = dma.vmem_to_smem %s18, 16, [#allocation3], [#allocation2]
  %s22 = sshll.u32 %s1, 4
  %s23 = int_to_ptr.vmem [resolvable:$true] %s22
  %25 = dma.vmem_to_smem %s23, 16, [#allocation4], [#allocation2]
  %27 = dma.done [#allocation2], 32
  %28 = sfence
  $region1: #{tpu_custom_call.1} parent=0
    #allocation5 [shape = 'u8[4096]{0}', space=vmem, size = 0x1000, scoped, tag = 'output window, operand 0']
    #allocation6 [shape = 's32[2]{0}', space=sflag, size = 0x8, scoped, tag = 'scoped memory for tpu_custom_call.1']
    %29 = vsyncpa [#allocation6], 0
    %s30 = scalar_lea.sflag [#allocation6], 1
    %31 = vsyncpa %s30, 0
    loop: start=0, step=1, limit=4
    $region2: #{tpu_custom_call.1} parent=1 // loop_pre_header
      _
    $region3: #{tpu_custom_call.1} parent=1 // loop_header
      %s33 = sphi 0, %s37
      %p34 = scmp.ge.s32.totalorder %s33, 4
      %s40 = sphi 0, %s52
      %s41 = sphi 0, %s48
      %s42 = sphi 0, %s40
      %s43 = sphi 0, %s41
      %s44 = sphi 0, %s42
      %s45 = sphi 0, %s43
      %s57 = sphi 0, %s59
      %s60 = sphi 0, %s57
      %s61 = sphi 0, %s60
      %s77 = sphi 0, %s61
      %s85 = sphi 0, %s87
      %s88 = sphi 0, %s85
      %s89 = sphi 0, %s88
      %s105 = sphi 0, %s89
      %s113 = sphi 0, %s115
      %s116 = sphi 0, %s113
      %s117 = sphi 0, %s116
      %s133 = sphi 0, %s117
      %s137 = sphi 0, %s137
      %s139 = sphi 0, %s137
      %s140 = sphi 0, %s139
      %s154 = sphi 0, %s140
      %s158 = sphi 0, %s158
      %s160 = sphi 0, %s158
      %s161 = sphi 0, %s160
      %s175 = sphi 0, %s161
      %s179 = sphi 0, %s179
      %s181 = sphi 0, %s179
      %s182 = sphi 0, %s181
      %s196 = sphi 0, %s182
      %s200 = sphi 0, %s200
      %s202 = sphi 0, %s200
      %s203 = sphi 0, %s202
      %s217 = sphi 0, %s203
      %s221 = sphi 0, %s221
      %s223 = sphi 0, %s221
      %s224 = sphi 0, %s223
      %s238 = sphi 0, %s224
      %s242 = sphi 0, %s242
      %s244 = sphi 0, %s242
      %s245 = sphi 0, %s244
      %s259 = sphi 0, %s245
      %s265 = sphi 0, %s267
      %s268 = sphi 0, %s265
      %s269 = sphi 0, %s268
      %s285 = sphi 0, %s269
    $region4: #{tpu_custom_call.1} parent=1 // loop_header_branch
      %36 = sbr.rel (%p34) target = $region8
    $region5: #{tpu_custom_call.1} parent=1 // loop_body
      %s38 = ssub.s32 %s33, 1
      %s39 = ssub.s32 %s33, 2
      %s46 = sadd.s32 1, %s41
      %p47 = scmp.ge.s32.totalorder %s46, 1
      %s48 = scalar_select %p47, 0, %s46
      %s49 = sadd.s32 1, %s40
      %s50 = scalar_select %p47, %s49, %s40
      %p51 = scmp.ge.s32.totalorder %s50, 2
      %s52 = scalar_select %p51, 0, %s50
      %s53 = ssub.s32 %s40, %s52
      %s54 = ssub.s32 %s41, %s48
      %s55 = sor.u32 %s53, %s54
      %p56 = scmp.eq.s32.totalorder %s55, 0
      %s58 = sadd.s32 %s57, 1
      %s59 = scalar_select %p56, %s57, %s58
      %p62 = pneg %p56
      %p63 = scmp.eq.s32.totalorder %s33, 1
      %p64 = por %p62, %p63
      %p65 = scmp.ne.s32.totalorder %s57, %s60
      %p66 = scmp.eq.s32.totalorder %s33, 0
      %p67 = por %p65, %p66
      %p68 = scmp.ne.s32.totalorder %s57, %s60
      %p69 = scmp.eq.s32.totalorder %s38, 1
      %p70 = por %p68, %p69
      %p71 = scmp.ne.s32.totalorder %s60, %s61
      %p72 = scmp.eq.s32.totalorder %s38, 0
      %p73 = por %p71, %p72
      %p74 = scmp.ne.s32.totalorder %s60, %s61
      %p75 = scmp.eq.s32.totalorder %s39, 1
      %p76 = por %p74, %p75
      %p78 = scmp.ne.s32.totalorder %s61, %s77
      %p79 = scmp.eq.s32.totalorder %s39, 0
      %p80 = por %p78, %p79
      %s81 = ssub.s32 %s40, %s52
      %s82 = ssub.s32 %s41, %s48
      %s83 = sor.u32 %s81, %s82
      %p84 = scmp.eq.s32.totalorder %s83, 0
      %s86 = sadd.s32 %s85, 1
      %s87 = scalar_select %p84, %s85, %s86
      %p90 = pneg %p84
      %p91 = scmp.eq.s32.totalorder %s33, 1
      %p92 = por %p90, %p91
      %p93 = scmp.ne.s32.totalorder %s85, %s88
      %p94 = scmp.eq.s32.totalorder %s33, 0
      %p95 = por %p93, %p94
      %p96 = scmp.ne.s32.totalorder %s85, %s88
      %p97 = scmp.eq.s32.totalorder %s38, 1
      %p98 = por %p96, %p97
      %p99 = scmp.ne.s32.totalorder %s88, %s89
      %p100 = scmp.eq.s32.totalorder %s38, 0
      %p101 = por %p99, %p100
      %p102 = scmp.ne.s32.totalorder %s88, %s89
      %p103 = scmp.eq.s32.totalorder %s39, 1
      %p104 = por %p102, %p103
      %p106 = scmp.ne.s32.totalorder %s89, %s105
      %p107 = scmp.eq.s32.totalorder %s39, 0
      %p108 = por %p106, %p107
      %s109 = ssub.s32 %s40, %s52
      %s110 = ssub.s32 %s41, %s48
      %s111 = sor.u32 %s109, %s110
      %p112 = scmp.eq.s32.totalorder %s111, 0
      %s114 = sadd.s32 %s113, 1
      %s115 = scalar_select %p112, %s113, %s114
      %p118 = pneg %p112
      %p119 = scmp.eq.s32.totalorder %s33, 1
      %p120 = por %p118, %p119
      %p121 = scmp.ne.s32.totalorder %s113, %s116
      %p122 = scmp.eq.s32.totalorder %s33, 0
      %p123 = por %p121, %p122
      %p124 = scmp.ne.s32.totalorder %s113, %s116
      %p125 = scmp.eq.s32.totalorder %s38, 1
      %p126 = por %p124, %p125
      %p127 = scmp.ne.s32.totalorder %s116, %s117
      %p128 = scmp.eq.s32.totalorder %s38, 0
      %p129 = por %p127, %p128
      %p130 = scmp.ne.s32.totalorder %s116, %s117
      %p131 = scmp.eq.s32.totalorder %s39, 1
      %p132 = por %p130, %p131
      %p134 = scmp.ne.s32.totalorder %s117, %s133
      %p135 = scmp.eq.s32.totalorder %s39, 0
      %p136 = por %p134, %p135
      %s138 = sadd.s32 %s137, 1
      %p141 = scmp.eq.s32.totalorder %s33, 1
      %p142 = scmp.ne.s32.totalorder %s137, %s139
      %p143 = scmp.eq.s32.totalorder %s33, 0
      %p144 = por %p142, %p143
      %p145 = scmp.ne.s32.totalorder %s137, %s139
      %p146 = scmp.eq.s32.totalorder %s38, 1
      %p147 = por %p145, %p146
      %p148 = scmp.ne.s32.totalorder %s139, %s140
      %p149 = scmp.eq.s32.totalorder %s38, 0
      %p150 = por %p148, %p149
      %p151 = scmp.ne.s32.totalorder %s139, %s140
      %p152 = scmp.eq.s32.totalorder %s39, 1
      %p153 = por %p151, %p152
      %p155 = scmp.ne.s32.totalorder %s140, %s154
      %p156 = scmp.eq.s32.totalorder %s39, 0
      %p157 = por %p155, %p156
      %s159 = sadd.s32 %s158, 1
      %p162 = scmp.eq.s32.totalorder %s33, 1
      %p163 = scmp.ne.s32.totalorder %s158, %s160
      %p164 = scmp.eq.s32.totalorder %s33, 0
      %p165 = por %p163, %p164
      %p166 = scmp.ne.s32.totalorder %s158, %s160
      %p167 = scmp.eq.s32.totalorder %s38, 1
      %p168 = por %p166, %p167
      %p169 = scmp.ne.s32.totalorder %s160, %s161
      %p170 = scmp.eq.s32.totalorder %s38, 0
      %p171 = por %p169, %p170
      %p172 = scmp.ne.s32.totalorder %s160, %s161
      %p173 = scmp.eq.s32.totalorder %s39, 1
      %p174 = por %p172, %p173
      %p176 = scmp.ne.s32.totalorder %s161, %s175
      %p177 = scmp.eq.s32.totalorder %s39, 0
      %p178 = por %p176, %p177
      %s180 = sadd.s32 %s179, 1
      %p183 = scmp.eq.s32.totalorder %s33, 1
      %p184 = scmp.ne.s32.totalorder %s179, %s181
      %p185 = scmp.eq.s32.totalorder %s33, 0
      %p186 = por %p184, %p185
      %p187 = scmp.ne.s32.totalorder %s179, %s181
      %p188 = scmp.eq.s32.totalorder %s38, 1
      %p189 = por %p187, %p188
      %p190 = scmp.ne.s32.totalorder %s181, %s182
      %p191 = scmp.eq.s32.totalorder %s38, 0
      %p192 = por %p190, %p191
      %p193 = scmp.ne.s32.totalorder %s181, %s182
      %p194 = scmp.eq.s32.totalorder %s39, 1
      %p195 = por %p193, %p194
      %p197 = scmp.ne.s32.totalorder %s182, %s196
      %p198 = scmp.eq.s32.totalorder %s39, 0
      %p199 = por %p197, %p198
      %s201 = sadd.s32 %s200, 1
      %p204 = scmp.eq.s32.totalorder %s33, 1
      %p205 = scmp.ne.s32.totalorder %s200, %s202
      %p206 = scmp.eq.s32.totalorder %s33, 0
      %p207 = por %p205, %p206
      %p208 = scmp.ne.s32.totalorder %s200, %s202
      %p209 = scmp.eq.s32.totalorder %s38, 1
      %p210 = por %p208, %p209
      %p211 = scmp.ne.s32.totalorder %s202, %s203
      %p212 = scmp.eq.s32.totalorder %s38, 0
      %p213 = por %p211, %p212
      %p214 = scmp.ne.s32.totalorder %s202, %s203
      %p215 = scmp.eq.s32.totalorder %s39, 1
      %p216 = por %p214, %p215
      %p218 = scmp.ne.s32.totalorder %s203, %s217
      %p219 = scmp.eq.s32.totalorder %s39, 0
      %p220 = por %p218, %p219
      %s222 = sadd.s32 %s221, 1
      %p225 = scmp.eq.s32.totalorder %s33, 1
      %p226 = scmp.ne.s32.totalorder %s221, %s223
      %p227 = scmp.eq.s32.totalorder %s33, 0
      %p228 = por %p226, %p227
      %p229 = scmp.ne.s32.totalorder %s221, %s223
      %p230 = scmp.eq.s32.totalorder %s38, 1
      %p231 = por %p229, %p230
      %p232 = scmp.ne.s32.totalorder %s223, %s224
      %p233 = scmp.eq.s32.totalorder %s38, 0
      %p234 = por %p232, %p233
      %p235 = scmp.ne.s32.totalorder %s223, %s224
      %p236 = scmp.eq.s32.totalorder %s39, 1
      %p237 = por %p235, %p236
      %p239 = scmp.ne.s32.totalorder %s224, %s238
      %p240 = scmp.eq.s32.totalorder %s39, 0
      %p241 = por %p239, %p240
      %s243 = sadd.s32 %s242, 1
      %p246 = scmp.eq.s32.totalorder %s33, 1
      %p247 = scmp.ne.s32.totalorder %s242, %s244
      %p248 = scmp.eq.s32.totalorder %s33, 0
      %p249 = por %p247, %p248
      %p250 = scmp.ne.s32.totalorder %s242, %s244
      %p251 = scmp.eq.s32.totalorder %s38, 1
      %p252 = por %p250, %p251
      %p253 = scmp.ne.s32.totalorder %s244, %s245
      %p254 = scmp.eq.s32.totalorder %s38, 0
      %p255 = por %p253, %p254
      %p256 = scmp.ne.s32.totalorder %s244, %s245
      %p257 = scmp.eq.s32.totalorder %s39, 1
      %p258 = por %p256, %p257
      %p260 = scmp.ne.s32.totalorder %s245, %s259
      %p261 = scmp.eq.s32.totalorder %s39, 0
      %p262 = por %p260, %p261
      %s263 = ssub.s32 %s40, %s52
      %p264 = scmp.eq.s32.totalorder %s263, 0
      %s266 = sadd.s32 %s265, 1
      %s267 = scalar_select %p264, %s265, %s266
      %p270 = pneg %p264
      %p271 = scmp.eq.s32.totalorder %s33, 1
      %p272 = por %p270, %p271
      %p273 = scmp.ne.s32.totalorder %s265, %s268
      %p274 = scmp.eq.s32.totalorder %s33, 0
      %p275 = por %p273, %p274
      %p276 = scmp.ne.s32.totalorder %s265, %s268
      %p277 = scmp.eq.s32.totalorder %s38, 1
      %p278 = por %p276, %p277
      %p279 = scmp.ne.s32.totalorder %s268, %s269
      %p280 = scmp.eq.s32.totalorder %s38, 0
      %p281 = por %p279, %p280
      %p282 = scmp.ne.s32.totalorder %s268, %s269
      %p283 = scmp.eq.s32.totalorder %s39, 1
      %p284 = por %p282, %p283
      %p286 = scmp.ne.s32.totalorder %s269, %s285
      %p287 = scmp.eq.s32.totalorder %s39, 0
      %p288 = por %p286, %p287
      %p289 = scmp.le.s32.totalorder 1, %s33
      %p290 = scmp.lt.s32.totalorder %s33, 3
      %p291 = pnand %p289, %p290
      %p292 = pneg %p291
      // Predicated region
      $region9: #{tpu_custom_call.1} parent=5 // pred_check
        _
      $region10: #{tpu_custom_call.1} parent=5 // pred_check_branch
        %294 = sbr.rel (%p291) target = $region12
      $region11: #{tpu_custom_call.1} parent=5 // pred_region
        %s295 = ssub.s32 %s33, 1
        // Predicated region
        $region13: #{tpu_custom_call.1} parent=11 // pred_check
          %p296 = pneg %p150
        $region14: #{tpu_custom_call.1} parent=11 // pred_check_branch
          %298 = sbr.rel (%p296) target = $region16
        $region15: #{tpu_custom_call.1} parent=11 // pred_region
          _
        $region16: #{tpu_custom_call.1} parent=11 // pred_fallthru
          _
        // Predicated region
        $region17: #{tpu_custom_call.1} parent=11 // pred_check
          %p299 = pneg %p171
        $region18: #{tpu_custom_call.1} parent=11 // pred_check_branch
          %301 = sbr.rel (%p299) target = $region20
        $region19: #{tpu_custom_call.1} parent=11 // pred_region
          _
        $region20: #{tpu_custom_call.1} parent=11 // pred_fallthru
          _
        // Predicated region
        $region21: #{tpu_custom_call.1} parent=11 // pred_check
          %p302 = pneg %p192
        $region22: #{tpu_custom_call.1} parent=11 // pred_check_branch
          %304 = sbr.rel (%p302) target = $region24
        $region23: #{tpu_custom_call.1} parent=11 // pred_region
          _
        $region24: #{tpu_custom_call.1} parent=11 // pred_fallthru
          _
        // Predicated region
        $region25: #{tpu_custom_call.1} parent=11 // pred_check
          %p305 = pneg %p213
        $region26: #{tpu_custom_call.1} parent=11 // pred_check_branch
          %307 = sbr.rel (%p305) target = $region28
        $region27: #{tpu_custom_call.1} parent=11 // pred_region
          _
        $region28: #{tpu_custom_call.1} parent=11 // pred_fallthru
          _
        // Predicated region
        $region29: #{tpu_custom_call.1} parent=11 // pred_check
          %p308 = pneg %p234
        $region30: #{tpu_custom_call.1} parent=11 // pred_check_branch
          %310 = sbr.rel (%p308) target = $region32
        $region31: #{tpu_custom_call.1} parent=11 // pred_region
          _
        $region32: #{tpu_custom_call.1} parent=11 // pred_fallthru
          _
        // Predicated region
        $region33: #{tpu_custom_call.1} parent=11 // pred_check
          %p311 = pneg %p255
        $region34: #{tpu_custom_call.1} parent=11 // pred_check_branch
          %313 = sbr.rel (%p311) target = $region36
        $region35: #{tpu_custom_call.1} parent=11 // pred_region
          _
        $region36: #{tpu_custom_call.1} parent=11 // pred_fallthru
          _
      $region12: #{tpu_custom_call.1} parent=5 // pred_fallthru
        _
      %p314 = scmp.lt.s32.totalorder %s33, 2
      // Predicated region
      $region37: #{tpu_custom_call.1} parent=5 // pred_check
        %p315 = pneg %p314
      $region38: #{tpu_custom_call.1} parent=5 // pred_check_branch
        %317 = sbr.rel (%p315) target = $region40
      $region39: #{tpu_custom_call.1} parent=5 // pred_region
        // Predicated region
        $region41: #{tpu_custom_call.1} parent=39 // pred_check
          %p318 = pneg %p67
        $region42: #{tpu_custom_call.1} parent=39 // pred_check_branch
          %320 = sbr.rel (%p318) target = $region44
        $region43: #{tpu_custom_call.1} parent=39 // pred_region
          %p321 = scmp.lt.s32.totalorder %s40, 1
          %s322 = scalar_select %p321, %s40, 1
          %p323 = scmp.lt.s32.totalorder %s41, 0
          %s324 = scalar_select %p323, %s41, 0
          %s325 = sadd.s32 %s324, %s322
          %s326 = smul.addr %s325, 4
          %s327 = scalar_lea.vmem %s2, %s326
        $region44: #{tpu_custom_call.1} parent=39 // pred_fallthru
          _
        // Predicated region
        $region45: #{tpu_custom_call.1} parent=39 // pred_check
          %p328 = pneg %p95
        $region46: #{tpu_custom_call.1} parent=39 // pred_check_branch
          %330 = sbr.rel (%p328) target = $region48
        $region47: #{tpu_custom_call.1} parent=39 // pred_region
          %p331 = scmp.lt.s32.totalorder %s40, 1
          %s332 = scalar_select %p331, %s40, 1
          %p333 = scmp.lt.s32.totalorder %s41, 0
          %s334 = scalar_select %p333, %s41, 0
          %s335 = sadd.s32 %s334, %s332
          %s336 = smul.addr %s335, 4
          %s337 = scalar_lea.vmem %s3, %s336
        $region48: #{tpu_custom_call.1} parent=39 // pred_fallthru
          _
        // Predicated region
        $region49: #{tpu_custom_call.1} parent=39 // pred_check
          %p338 = pneg %p123
        $region50: #{tpu_custom_call.1} parent=39 // pred_check_branch
          %340 = sbr.rel (%p338) target = $region52
        $region51: #{tpu_custom_call.1} parent=39 // pred_region
          %p341 = scmp.lt.s32.totalorder %s40, 1
          %s342 = scalar_select %p341, %s40, 1
          %p343 = scmp.lt.s32.totalorder %s41, 0
          %s344 = scalar_select %p343, %s41, 0
          %s345 = sadd.s32 %s344, %s342
          %s346 = smul.addr %s345, 4
          %s347 = scalar_lea.vmem %s4, %s346
        $region52: #{tpu_custom_call.1} parent=39 // pred_fallthru
          _
      $region40: #{tpu_custom_call.1} parent=5 // pred_fallthru
        _
      %p348 = scmp.le.s32.totalorder 1, %s33
      %p349 = scmp.lt.s32.totalorder %s33, 3
      %p350 = pnand %p348, %p349
      %p351 = pneg %p350
      // Predicated region
      $region53: #{tpu_custom_call.1} parent=5 // pred_check
        _
      $region54: #{tpu_custom_call.1} parent=5 // pred_check_branch
        %353 = sbr.rel (%p350) target = $region56
      $region55: #{tpu_custom_call.1} parent=5 // pred_region
        %s354 = ssub.s32 %s33, 1
        %p355 = scmp.lt.s32.totalorder %s42, 1
        %s356 = scalar_select %p355, %s42, 1
        %p357 = scmp.lt.s32.totalorder %s43, 0
        %s358 = scalar_select %p357, %s43, 0
        %s359 = sadd.s32 %s358, %s356
        %s360 = smul.addr %s359, 4
        %s361 = scalar_lea.vmem %s2, %s360
        %p362 = pneg %p73
        %p363 = pneg %p70
        %p364 = scmp.lt.s32.totalorder %s42, 1
        %s365 = scalar_select %p364, %s42, 1
        %p366 = scmp.lt.s32.totalorder %s43, 0
        %s367 = scalar_select %p366, %s43, 0
        %s368 = sadd.s32 %s367, %s365
        %s369 = smul.addr %s368, 4
        %s370 = scalar_lea.vmem %s3, %s369
        %p371 = pneg %p101
        %p372 = pneg %p98
        %p373 = scmp.lt.s32.totalorder %s42, 1
        %s374 = scalar_select %p373, %s42, 1
        %p375 = scmp.lt.s32.totalorder %s43, 0
        %s376 = scalar_select %p375, %s43, 0
        %s377 = sadd.s32 %s376, %s374
        %s378 = smul.addr %s377, 4
        %s379 = scalar_lea.vmem %s4, %s378
        %p380 = pneg %p129
        %p381 = pneg %p126
        %p382 = pneg %p150
        %p383 = pneg %p147
        %p384 = pneg %p171
        %p385 = pneg %p168
        %p386 = pneg %p192
        %p387 = pneg %p189
        %p388 = pneg %p213
        %p389 = pneg %p210
        %p390 = pneg %p234
        %p391 = pneg %p231
        %p392 = pneg %p255
        %p393 = pneg %p252
        %p394 = pneg %p281
        %p395 = pneg %p278
        %s396 = sand.u32 %s268, 1
        %s397 = scalar_lea.sflag [#allocation6], %s396
        %s398 = sand.u32 %s268, 1
        %s399 = smul.addr %s398, 4
        %s400 = scalar_lea.vmem [#allocation5], %s399
        %p401 = scmp.lt.s32.totalorder %s42, 1
        %s402 = scalar_select %p401, %s42, 1
        %p403 = scmp.lt.s32.totalorder %s43, 0
        %s404 = scalar_select %p403, %s43, 0
        %s405 = sadd.s32 %s404, %s402
        %s406 = smul.addr %s405, 4
        %s407 = scalar_lea.vmem %s2, %s406
        %p408 = scmp.lt.s32.totalorder %s42, 1
        %s409 = scalar_select %p408, %s42, 1
        %p410 = scmp.lt.s32.totalorder %s43, 0
        %s411 = scalar_select %p410, %s43, 0
        %s412 = sadd.s32 %s411, %s409
        %s413 = smul.addr %s412, 4
        %s414 = scalar_lea.vmem %s3, %s413
        %p415 = scmp.lt.s32.totalorder %s42, 1
        %s416 = scalar_select %p415, %s42, 1
        %p417 = scmp.lt.s32.totalorder %s43, 0
        %s418 = scalar_select %p417, %s43, 0
        %s419 = sadd.s32 %s418, %s416
        %s420 = smul.addr %s419, 4
        %s421 = scalar_lea.vmem %s4, %s420
        %s422 = sld [smem:[#allocation3 + %s42]]
        %s423 = sld [smem:[#allocation4 + %s42]]
        %v424 = vld [vmem:[%s407] sm:$0xf]
        %v425 = vld [vmem:[%s414] sm:$0xf]
        %v426 = vld [vmem:[%s421] sm:$0xf]
        %v427 = vsub.f32 %v424, %v425
        %v428 = vstv %s422
        %v429 = vmul.f32 %v428, %v427
        %v430 = vstv %s423
        %v431 = vmul.f32 %v430, %v426
        %v432 = vadd.f32 %v429, %v431
        %v433 = vld [vmem:[%s5] sm:$0xff]
        %v434 = vld [vmem:[%s5 + $0x8] sm:$0xff]
        %v435 = vld [vmem:[%s5 + $0x10] sm:$0xff]
        %v436 = vld [vmem:[%s5 + $0x18] sm:$0xff]
        %v437 = vld [vmem:[%s6] sm:$0xff]
        %v438 = vld [vmem:[%s6 + $0x8] sm:$0xff]
        %v439 = vld [vmem:[%s6 + $0x10] sm:$0xff]
        %v440 = vld [vmem:[%s6 + $0x18] sm:$0xff]
        %vm441 = vcmask 31744
        %v443 = vsel %vm441, %v437, 0
        %v446 = vsel %vm441, %v438, 0
        %v449 = vsel %vm441, %v439, 0
        %v452 = vsel %vm441, %v440, 0
        %vm454 = vcmask 1043456
        %v456 = vsel %vm454, %v432, 0
        %458 = vmatpush.msra.mxu0 0.0
        %459 = vmatpush.msra.mxu0 0.0
        %460 = vmatpush.msra.mxu0 0.0
        %461 = vmatpush.msra.mxu0 0.0
        %462 = vmatpush.msra.mxu0 0.0
        %463 = vmatpush.msra.mxu0 0.0
        %464 = vmatpush.msra.mxu0 0.0
        %465 = vmatpush.msra.mxu0 0.0
        %466 = vmatpush.msra.mxu0 0.0
        %467 = vmatpush.msra.mxu0 0.0
        %468 = vmatpush.msra.mxu0 0.0
        %469 = vmatpush.msra.mxu0 0.0
        %470 = vmatpush.msra.mxu0 0.0
        %471 = vmatpush.msra.mxu0 0.0
        %472 = vmatpush.msra.mxu0 0.0
        %473 = vmatpush.msra.mxu0 %v456
        %474 = vmatmul.f32.gmra.mxu0 %v443
        %v475 = vpop.f32.mrf.mxu0
        %v476 = vadd.f32 0.0, %v475
        %477 = vmatmul.f32.gmra.mxu0 %v446
        %v478 = vpop.f32.mrf.mxu0
        %v479 = vadd.f32 0.0, %v478
        %480 = vmatmul.f32.gmra.mxu0 %v449
        %v481 = vpop.f32.mrf.mxu0
        %v482 = vadd.f32 0.0, %v481
        %483 = vmatmul.f32.gmra.mxu0 %v452
        %v484 = vpop.f32.mrf.mxu0
        %v485 = vadd.f32 0.0, %v484
        %486 = vdwg.mxu0
        %v488 = vsel %vm441, %v433, 0
        %v491 = vsel %vm441, %v434, 0
        %v494 = vsel %vm441, %v435, 0
        %v497 = vsel %vm441, %v436, 0
        %v500 = vsel %vm454, %v424, 0
        %502 = vmatpush.msra.mxu0 0.0
        %503 = vmatpush.msra.mxu0 0.0
        %504 = vmatpush.msra.mxu0 0.0
        %505 = vmatpush.msra.mxu0 0.0
        %506 = vmatpush.msra.mxu0 0.0
        %507 = vmatpush.msra.mxu0 0.0
        %508 = vmatpush.msra.mxu0 0.0
        %509 = vmatpush.msra.mxu0 0.0
        %510 = vmatpush.msra.mxu0 0.0
        %511 = vmatpush.msra.mxu0 0.0
        %512 = vmatpush.msra.mxu0 0.0
        %513 = vmatpush.msra.mxu0 0.0
        %514 = vmatpush.msra.mxu0 0.0
        %515 = vmatpush.msra.mxu0 0.0
        %516 = vmatpush.msra.mxu0 0.0
        %517 = vmatpush.msra.mxu0 %v500
        %518 = vmatmul.f32.gmra.mxu0 %v488
        %v519 = vpop.f32.mrf.mxu0
        %v520 = vadd.f32 %v476, %v519
        %521 = vmatmul.f32.gmra.mxu0 %v491
        %v522 = vpop.f32.mrf.mxu0
        %v523 = vadd.f32 %v479, %v522
        %524 = vmatmul.f32.gmra.mxu0 %v494
        %v525 = vpop.f32.mrf.mxu0
        %v526 = vadd.f32 %v482, %v525
        %527 = vmatmul.f32.gmra.mxu0 %v497
        %v528 = vpop.f32.mrf.mxu0
        %v529 = vadd.f32 %v485, %v528
        %530 = vdwg.mxu0
        %v531 = vld [vmem:[%s7] sm:$0xff]
        %v532 = vld [vmem:[%s7 + $0x8] sm:$0xff]
        %v533 = vld [vmem:[%s7 + $0x10] sm:$0xff]
        %v534 = vld [vmem:[%s7 + $0x18] sm:$0xff]
        %536 = vset.pattern.permute.xlu0 0
        %537 = vperm.xlu0 %536, %v531
        %v538 = vpop.permute.xlu0 %537
        %541 = vset.pattern.permute.xlu0 0
        %542 = vperm.xlu0 %541, %v532
        %v543 = vpop.permute.xlu0 %542
        %546 = vset.pattern.permute.xlu0 0
        %547 = vperm.xlu0 %546, %v533
        %v548 = vpop.permute.xlu0 %547
        %551 = vset.pattern.permute.xlu0 0
        %552 = vperm.xlu0 %551, %v534
        %v553 = vpop.permute.xlu0 %552
        %v555 = vadd.f32 %v520, %v538
        %v556 = vadd.f32 %v523, %v543
        %v557 = vadd.f32 %v526, %v548
        %v558 = vadd.f32 %v529, %v553
        %v559 = vld [vmem:[%s8] sm:$0xff]
        %v560 = vld [vmem:[%s8 + $0x8] sm:$0xff]
        %v561 = vld [vmem:[%s8 + $0x10] sm:$0xff]
        %v562 = vld [vmem:[%s8 + $0x18] sm:$0xff]
        %v563 = vmul.f32 %v428, %v559
        %v564 = vmul.f32 %v428, %v560
        %v565 = vmul.f32 %v428, %v561
        %v566 = vmul.f32 %v428, %v562
        %568 = vset.pattern.permute.xlu0 0
        %569 = vperm.xlu0 %568, %v563
        %v570 = vpop.permute.xlu0 %569
        %573 = vset.pattern.permute.xlu0 0
        %574 = vperm.xlu0 %573, %v564
        %v575 = vpop.permute.xlu0 %574
        %578 = vset.pattern.permute.xlu0 0
        %579 = vperm.xlu0 %578, %v565
        %v580 = vpop.permute.xlu0 %579
        %583 = vset.pattern.permute.xlu0 0
        %584 = vperm.xlu0 %583, %v566
        %v585 = vpop.permute.xlu0 %584
        %v587 = vadd.f32 %v555, %v570
        %v588 = vadd.f32 %v556, %v575
        %v589 = vadd.f32 %v557, %v580
        %v590 = vadd.f32 %v558, %v585
        %v591 = vxor.u32 %v587, 2147483648
        %v592 = vxor.u32 %v588, 2147483648
        %v593 = vxor.u32 %v589, 2147483648
        %v594 = vxor.u32 %v590, 2147483648
        %v595 = vmul.f32 %v591, 1.442695
        %v596 = vpow.pop %v595
        %v597 = vmul.f32 %v592, 1.442695
        %v598 = vpow.pop %v597
        %v599 = vmul.f32 %v593, 1.442695
        %v600 = vpow.pop %v599
        %v601 = vmul.f32 %v594, 1.442695
        %v602 = vpow.pop %v601
        %v603 = vadd.f32 %v596, 1.0
        %v604 = vadd.f32 %v598, 1.0
        %v605 = vadd.f32 %v600, 1.0
        %v606 = vadd.f32 %v602, 1.0
        %v607 = vrcp.pop %v603
        %v608 = vmul.f32 %v603, %v607
        %v609 = vsub.f32 1.0, %v608
        %v610 = vmul.f32 %v607, %v609
        %v611 = vadd.f32 %v607, %v610
        %vm612 = vweird.f32 %v603
        %vm613 = vweird.f32 %v607
        %vm614 = vmor %vm612, %vm613
        %v615 = vsel %vm614, %v607, %v611
        %v616 = vand.u32 2147483647, %v603
        %vm617 = vcmp.eq.f32.partialorder %v616, 8.507059e+37
        %v618 = vand.u32 %v603, 2147483648
        %v619 = vor.u32 1.1754944e-38, %v618
        %v620 = vsel %vm617, %v619, %v615
        %v621 = vmul.f32 1.0, %v620
        %v622 = vrcp.pop %v604
        %v623 = vmul.f32 %v604, %v622
        %v624 = vsub.f32 1.0, %v623
        %v625 = vmul.f32 %v622, %v624
        %v626 = vadd.f32 %v622, %v625
        %vm627 = vweird.f32 %v604
        %vm628 = vweird.f32 %v622
        %vm629 = vmor %vm627, %vm628
        %v630 = vsel %vm629, %v622, %v626
        %v631 = vand.u32 2147483647, %v604
        %vm632 = vcmp.eq.f32.partialorder %v631, 8.507059e+37
        %v633 = vand.u32 %v604, 2147483648
        %v634 = vor.u32 1.1754944e-38, %v633
        %v635 = vsel %vm632, %v634, %v630
        %v636 = vmul.f32 1.0, %v635
        %v637 = vrcp.pop %v605
        %v638 = vmul.f32 %v605, %v637
        %v639 = vsub.f32 1.0, %v638
        %v640 = vmul.f32 %v637, %v639
        %v641 = vadd.f32 %v637, %v640
        %vm642 = vweird.f32 %v605
        %vm643 = vweird.f32 %v637
        %vm644 = vmor %vm642, %vm643
        %v645 = vsel %vm644, %v637, %v641
        %v646 = vand.u32 2147483647, %v605
        %vm647 = vcmp.eq.f32.partialorder %v646, 8.507059e+37
        %v648 = vand.u32 %v605, 2147483648
        %v649 = vor.u32 1.1754944e-38, %v648
        %v650 = vsel %vm647, %v649, %v645
        %v651 = vmul.f32 1.0, %v650
        %v652 = vrcp.pop %v606
        %v653 = vmul.f32 %v606, %v652
        %v654 = vsub.f32 1.0, %v653
        %v655 = vmul.f32 %v652, %v654
        %v656 = vadd.f32 %v652, %v655
        %vm657 = vweird.f32 %v606
        %vm658 = vweird.f32 %v652
        %vm659 = vmor %vm657, %vm658
        %v660 = vsel %vm659, %v652, %v656
        %v661 = vand.u32 2147483647, %v606
        %vm662 = vcmp.eq.f32.partialorder %v661, 8.507059e+37
        %v663 = vand.u32 %v606, 2147483648
        %v664 = vor.u32 1.1754944e-38, %v663
        %v665 = vsel %vm662, %v664, %v660
        %v666 = vmul.f32 1.0, %v665
        %v667 = vmul.f32 %v587, %v621
        %v668 = vmul.f32 %v588, %v636
        %v669 = vmul.f32 %v589, %v651
        %v670 = vmul.f32 %v590, %v666
        %v671 = vld [vmem:[%s9] sm:$0xf]
        %v672 = vld [vmem:[%s10] sm:$0xf]
        %674 = vset.pattern.permute.xlu0 0
        %675 = vperm.xlu0 %674, %v672
        %v676 = vpop.permute.xlu0 %675
        %vm678 = vcmask 261120
        %v680 = vsel %vm678, %v671, 0
        %682 = vmatpush.msra.mxu0 0.0
        %683 = vmatpush.msra.mxu0 0.0
        %684 = vmatpush.msra.mxu0 0.0
        %685 = vmatpush.msra.mxu0 0.0
        %686 = vmatpush.msra.mxu0 0.0
        %687 = vmatpush.msra.mxu0 0.0
        %688 = vmatpush.msra.mxu0 0.0
        %689 = vmatpush.msra.mxu0 0.0
        %690 = vmatpush.msra.mxu0 0.0
        %691 = vmatpush.msra.mxu0 0.0
        %692 = vmatpush.msra.mxu0 0.0
        %693 = vmatpush.msra.mxu0 0.0
        %694 = vmatpush.msra.mxu0 %v670
        %695 = vmatpush.msra.mxu0 %v669
        %696 = vmatpush.msra.mxu0 %v668
        %697 = vmatpush.msra.mxu0 %v667
        %698 = vmatmul.f32.gmra.mxu0 %v680
        %v699 = vpop.f32.mrf.mxu0
        %v700 = vadd.f32 %v676, %v699
        %701 = vdwg.mxu0
        %v702 = vsub.f32 %v426, %v700
        %p703 = scmp.eq.s32.totalorder %s43, 0
        // Predicated region
        $region57: #{tpu_custom_call.1} parent=55 // pred_check
          %p704 = pneg %p703
        $region58: #{tpu_custom_call.1} parent=55 // pred_check_branch
          %706 = sbr.rel (%p704) target = $region60
        $region59: #{tpu_custom_call.1} parent=55 // pred_region
          %707 = vst [vmem:[%s400] sm:$0xf] 0.0
        $region60: #{tpu_custom_call.1} parent=55 // pred_fallthru
          _
        %v708 = vld [vmem:[%s400] sm:$0xf]
        %v709 = vmul.f32 %v702, %v702
        %v710 = vadd.f32 %v708, %v709
        %711 = vst [vmem:[%s400] sm:$0xf] %v710
        %s712 = sand.u32 %s268, 1
        %s713 = scalar_lea.sflag [#allocation6], %s712
        %s714 = sand.u32 %s268, 1
        %s715 = smul.addr %s714, 4
        %s716 = scalar_lea.vmem [#allocation5], %s715
        // Predicated region
        $region61: #{tpu_custom_call.1} parent=55 // pred_check
          %p717 = pneg %p278
        $region62: #{tpu_custom_call.1} parent=55 // pred_check_branch
          %719 = sbr.rel (%p717) target = $region64
        $region63: #{tpu_custom_call.1} parent=55 // pred_region
          %721 = vsyncadd %s713, 0
          %s722 = smul.addr %s42, 4
          %s723 = scalar_lea.hbm %s11, %s722
          %s725 = sshll.u32 %s716, 4
          %s726 = int_to_ptr.vmem [resolvable:$true] %s725
          %s727 = sshll.u32 %s723, 4
          %s728 = int_to_ptr.hbm [resolvable:$true] %s727
          %730 = dma.vmem_to_hbm [thread:$0]  %s726, 64, %s728, %s713
        $region64: #{tpu_custom_call.1} parent=55 // pred_fallthru
          _
      $region56: #{tpu_custom_call.1} parent=5 // pred_fallthru
        _
      %p731 = scmp.le.s32.totalorder 2, %s33
      // Predicated region
      $region65: #{tpu_custom_call.1} parent=5 // pred_check
        %p732 = pneg %p731
      $region66: #{tpu_custom_call.1} parent=5 // pred_check_branch
        %734 = sbr.rel (%p732) target = $region68
      $region67: #{tpu_custom_call.1} parent=5 // pred_region
        %s735 = ssub.s32 %s33, 2
        // Predicated region
        $region69: #{tpu_custom_call.1} parent=67 // pred_check
          %p736 = pneg %p284
        $region70: #{tpu_custom_call.1} parent=67 // pred_check_branch
          %738 = sbr.rel (%p736) target = $region72
        $region71: #{tpu_custom_call.1} parent=67 // pred_region
          %s739 = sand.u32 %s269, 1
          %s740 = scalar_lea.sflag [#allocation6], %s739
          %s741 = sand.u32 %s269, 1
          %s742 = smul.addr %s741, 4
          %s743 = scalar_lea.vmem [#allocation5], %s742
          %745 = dma.done %s740, 64
        $region72: #{tpu_custom_call.1} parent=67 // pred_fallthru
          _
      $region68: #{tpu_custom_call.1} parent=5 // pred_fallthru
        _
    $region6: #{tpu_custom_call.1} parent=1 // loop_footer
      %s37 = sadd.s32 1, %s33
    $region7: #{tpu_custom_call.1} parent=1 // loop_footer_branch
      %32 = sbr.rel target = $region3
    $region8: #{tpu_custom_call.1} parent=1 // loop_exit
      _
    %746 = vsyncpa [#allocation6], 1
    %s747 = scalar_lea.sflag [#allocation6], 1
    %748 = vsyncpa %s747, 1

</llo_original>
